<compile_context>
chip_gen: v5e
topology: v5e:2x2
jax: 0.10.0
libtpu: 0.0.40
codegen_flags: <defaults>
</compile_context>

<pallas_src>
import functools

import jax
import jax.numpy as jnp
from jax.experimental import pallas as pl
from jax.experimental.pallas import tpu as pltpu

LN_EPS = 1e-5


# ----------------------------------------------------------------------------
# Fused Block kernel: AdaLN -> MHA (+residual) -> LN2 -> FFN (+residual)
# One grid step == one batch tile; the activation never leaves VMEM.
# ----------------------------------------------------------------------------
def block_kernel(x_ref, scale_ref, shift_ref,          # activations / conditioning
                 wqkv_ref, bqkv_ref, wo_ref, bo_ref,   # attention weights
                 g2_ref, bt2_ref,                      # norm2 affine
                 w1_ref, b1_ref, w2_ref, b2_ref,       # FFN weights
                 o_ref, *, nhead):
    Bt, S, D = x_ref.shape
    M = Bt * S
    dh = D // nhead
    inv_sqrt_dh = 1.0 / float(dh) ** 0.5

    x_in = x_ref[...].astype(jnp.float32)               # (Bt, S, D)

    # ---- AdaLayerNorm (elementwise_affine=False) + timestep modulation (f32) ----
    mean = jnp.mean(x_in, axis=-1, keepdims=True)
    var = jnp.mean((x_in - mean) ** 2, axis=-1, keepdims=True)
    xn = (x_in - mean) * jax.lax.rsqrt(var + LN_EPS)
    scale = scale_ref[...].astype(jnp.float32)           # (Bt, 1, D)
    shift = shift_ref[...].astype(jnp.float32)           # (Bt, 1, D)
    x = xn * (1.0 + scale) + shift                       # (Bt, S, D) post-norm1

    # Fold batch into the matmul M dimension (trivial reshape: S % 8 == 0 or Bt==1).
    x2 = x.reshape(M, D)                                  # (M, D) f32 running activation
    xb = x2.astype(jnp.bfloat16)

    # ---- Fused dense QKV projection: (M, D) @ (D, 3D), lane-dense on the MXU ----
    qkv = jnp.dot(xb, wqkv_ref[...], preferred_element_type=jnp.float32)
    qkv = qkv + bqkv_ref[...].astype(jnp.float32)          # (M, 3D) f32

    q_all = qkv[:, :D] * inv_sqrt_dh                       # fold 1/sqrt(dh) into q
    k_all = qkv[:, D:2 * D]
    v_all = qkv[:, 2 * D:]

    # Head split: lane slices + stack (cheap XLU/VALU relayout, no MXU work).
    # Result is (G, S, dh) with G = nhead * Bt, g = h * Bt + b.
    def to_heads(t2):
        cols = [t2[:, h * dh:(h + 1) * dh].reshape(Bt, S, dh) for h in range(nhead)]
        return jnp.stack(cols, axis=0).reshape(nhead * Bt, S, dh)

    q = to_heads(q_all).astype(jnp.bfloat16)
    k = to_heads(k_all).astype(jnp.bfloat16)
    v = to_heads(v_all).astype(jnp.bfloat16)

    # ---- Scaled dot-product attention (per batch x head), softmax in f32 ----
    s = jnp.einsum("gqe,gke->gqk", q, k,
                   preferred_element_type=jnp.float32)      # (G, S, S)
    s = s - jnp.max(s, axis=-1, keepdims=True)
    p = jnp.exp(s)
    denom = jnp.sum(p, axis=-1, keepdims=True)
    # EUP reciprocal (free issue slot) instead of a VALU divide.
    p = p * pl.reciprocal(denom, approx=True)

    o = jnp.einsum("gqk,gke->gqe", p.astype(jnp.bfloat16), v,
                   preferred_element_type=jnp.float32)      # (G, S, dh)

    # ---- Concat heads and ONE dense output projection (K = D on the MXU) ----
    o4 = o.reshape(nhead, Bt, S, dh)
    o_cat = jnp.concatenate([o4[h] for h in range(nhead)], axis=-1)  # (Bt, S, D)
    o_cat = o_cat.reshape(M, D)
    attn = jnp.dot(o_cat.astype(jnp.bfloat16), wo_ref[...],
                   preferred_element_type=jnp.float32)
    attn = attn + bo_ref[...].astype(jnp.float32)            # (M, D)

    x2 = x2 + attn                                            # residual 1

    # ---- LayerNorm2 (affine) + FFN (relu) + residual (f32 norm, bf16 matmuls) ----
    mean2 = jnp.mean(x2, axis=-1, keepdims=True)
    var2 = jnp.mean((x2 - mean2) ** 2, axis=-1, keepdims=True)
    xn2 = (x2 - mean2) * jax.lax.rsqrt(var2 + LN_EPS)
    hid = xn2 * g2_ref[...].astype(jnp.float32) + bt2_ref[...].astype(jnp.float32)

    h1 = jnp.dot(hid.astype(jnp.bfloat16), w1_ref[...],
                 preferred_element_type=jnp.float32) + b1_ref[...].astype(jnp.float32)
    h1 = jnp.maximum(h1, 0.0)                                 # relu
    y = jnp.dot(h1.astype(jnp.bfloat16), w2_ref[...],
                preferred_element_type=jnp.float32) + b2_ref[...].astype(jnp.float32)

    out = (x2 + y).reshape(Bt, S, D)                          # residual 2
    o_ref[...] = out.astype(o_ref.dtype)


# ----------------------------------------------------------------------------
# Wrapper helpers
# ----------------------------------------------------------------------------
def _choose_batch_tile(B, S):
    """Fold batch into the matmul M dimension when S is small (target M >= 128)."""
    if S % 8 != 0:                    # keep the in-kernel flatten a trivial reshape
        return 1
    want = -(-128 // S)               # ceil(128 / S)
    bt = 1
    for cand in range(1, B + 1):
        if B % cand != 0 or cand * S > 2048:
            continue
        bt = cand
        if cand >= want:
            break
    # Prefer >= 2 grid steps (v7x has 2 TensorCores) if M can stay >= 128.
    if bt == B and B > 1:
        for cand in range(B // 2, 0, -1):
            if B % cand == 0 and cand * S >= 128:
                bt = cand
                break
    return bt


def _vmem_limit_bytes():
    """Generation-aware scoped-VMEM budget: ~3/4 of physical, capped at 100 MiB.

    v5e / v6e (128 MiB physical) -> ~96 MiB;  v7x (64 MiB physical) -> 48 MiB.
    """
    try:
        cap = int(pltpu.get_tpu_info().vmem_capacity_bytes)
    except Exception:
        cap = 64 * 1024 * 1024
    return int(min(cap * 3 // 4, 100 * 1024 * 1024))


def prepare_block_weights(p):
    """One-time host-side relayout: x @ W form, matmul weights in bf16.

    Call once at load time (hoisted out of the forward pass)."""
    wqkv = p["in_proj_w"].T.astype(jnp.bfloat16)          # (D, 3D) cols = [q | k | v]
    bqkv = p["in_proj_b"][None, :].astype(jnp.float32)    # (1, 3D)
    wo = p["out_proj_w"].T.astype(jnp.bfloat16)           # (D, D)
    bo = p["out_proj_b"][None, :].astype(jnp.float32)     # (1, D)
    g2 = p["ln2_g"][None, :].astype(jnp.float32)          # (1, D)
    bt2 = p["ln2_b"][None, :].astype(jnp.float32)         # (1, D)
    w1 = p["ffn_w1"].T.astype(jnp.bfloat16)               # (D, FF)
    b1 = p["ffn_b1"][None, :].astype(jnp.float32)         # (1, FF)
    w2 = p["ffn_w2"].T.astype(jnp.bfloat16)               # (FF, D)
    b2 = p["ffn_b2"][None, :].astype(jnp.float32)         # (1, D)
    return (wqkv, bqkv, wo, bo, g2, bt2, w1, b1, w2, b2)


def pallas_block(x, scale, shift, weights, nhead):
    B, S, D = x.shape
    assert D % nhead == 0
    wqkv, bqkv, wo, bo, g2, bt2, w1, b1, w2, b2 = weights
    FF = w1.shape[1]
    Bt = _choose_batch_tile(B, S)

    # Whole-array VMEM residency for replicated weights (single copy, no
    # per-grid-step double-buffering of constant blocks).
    vspec = pl.BlockSpec(memory_space=pltpu.MemorySpace.VMEM)

    flops = 2 * B * S * (4 * D * D + 2 * S * D + 2 * D * FF)
    transcendentals = B * nhead * S * S + 2 * B * S
    bytes_accessed = (
        4 * (2 * B * S * D + 2 * B * D)                       # activations + scale/shift
        + 2 * (3 * D * D + D * D + 2 * D * FF)                # bf16 weights
        + 4 * (3 * D + D + 2 * D + FF + D))                   # f32 biases / LN params

    return pl.pallas_call(
        functools.partial(block_kernel, nhead=nhead),
        out_shape=jax.ShapeDtypeStruct((B, S, D), x.dtype),
        grid=(B // Bt,),
        in_specs=[
            pl.BlockSpec((Bt, S, D), lambda i: (i, 0, 0)),    # src tile
            pl.BlockSpec((Bt, 1, D), lambda i: (i, 0, 0)),    # AdaLN scale
            pl.BlockSpec((Bt, 1, D), lambda i: (i, 0, 0)),    # AdaLN shift
            vspec, vspec, vspec, vspec,                       # attention weights
            vspec, vspec,                                     # norm2 affine
            vspec, vspec, vspec, vspec,                       # FFN weights
        ],
        out_specs=pl.BlockSpec((Bt, S, D), lambda i: (i, 0, 0)),
        compiler_params=pltpu.CompilerParams(
            dimension_semantics=("parallel",),                # shard batch tiles on v7x
            vmem_limit_bytes=_vmem_limit_bytes(),
        ),
        cost_estimate=pl.CostEstimate(
            flops=flops,
            transcendentals=transcendentals,
            bytes_accessed=bytes_accessed,
        ),
    )(x, scale, shift, wqkv, bqkv, wo, bo, g2, bt2, w1, b1, w2, b2)


# ----------------------------------------------------------------------------
# Parameter construction + full Block forward
# ----------------------------------------------------------------------------
def init_params(key, d_model, nhead, dim_feedforward):
    D, FF = d_model, dim_feedforward
    ks = jax.random.split(key, 12)
    s = 0.05

    def lin(k, out_dim, in_dim):
        kw, kb = jax.random.split(k)
        return (jax.random.normal(kw, (out_dim, in_dim), jnp.float32) * s,
                jax.random.normal(kb, (out_dim,), jnp.float32) * s)

    p = {}
    # AdaLayerNorm timestep-embedding MLP
    p["emb_w1"], p["emb_b1"] = lin(ks[0], D // 2, 1)
    p["emb_w2"], p["emb_b2"] = lin(ks[1], D, D // 2)
    p["ada_w"], p["ada_b"] = lin(ks[2], 2 * D, D)
    # MultiheadAttention
    p["in_proj_w"], p["in_proj_b"] = lin(ks[3], 3 * D, D)
    p["out_proj_w"], p["out_proj_b"] = lin(ks[4], D, D)
    # norm2 (affine LayerNorm)
    p["ln2_g"] = jnp.ones((D,), jnp.float32)
    p["ln2_b"] = jnp.zeros((D,), jnp.float32)
    # Feed-forward
    p["ffn_w1"], p["ffn_b1"] = lin(ks[5], FF, D)
    p["ffn_w2"], p["ffn_b2"] = lin(ks[6], D, FF)
    return p


def timestep_embedding(p, timestep):
    # Rearrange('b -> b 1') -> Linear -> ReLU -> Linear -> SiLU -> Linear -> chunk
    # TODO(synk): tiny (B,1) scalar MLP kept in plain JAX (not worth a kernel).
    t = timestep.astype(jnp.float32)[:, None]                       # (B, 1)
    h = jnp.maximum(t @ p["emb_w1"].T + p["emb_b1"], 0.0)           # (B, D//2)
    h = h @ p["emb_w2"].T + p["emb_b2"]                             # (B, D)
    h = h * jax.nn.sigmoid(h)                                       # SiLU
    emb = h @ p["ada_w"].T + p["ada_b"]                             # (B, 2D)
    D = emb.shape[-1] // 2
    scale = emb[:, None, :D]                                        # (B, 1, D)
    shift = emb[:, None, D:]                                        # (B, 1, D)
    return scale, shift


def block_forward(params, prepared_weights, src, timestep, nhead):
    scale, shift = timestep_embedding(params, timestep)
    return pallas_block(src, scale, shift, prepared_weights, nhead)


# ----------------------------------------------------------------------------
# Pure-JAX f32 reference (same math, no Pallas) for a correctness check
# ----------------------------------------------------------------------------
def block_reference(p, src, timestep, nhead):
    def ln(x, eps=LN_EPS):
        m = jnp.mean(x, axis=-1, keepdims=True)
        v = jnp.mean((x - m) ** 2, axis=-1, keepdims=True)
        return (x - m) / jnp.sqrt(v + eps)

    scale, shift = timestep_embedding(p, timestep)
    x = ln(src) * (1.0 + scale) + shift

    B, S, D = x.shape
    dh = D // nhead
    qkv = x @ p["in_proj_w"].T + p["in_proj_b"]
    q, k, v = qkv[..., :D], qkv[..., D:2 * D], qkv[..., 2 * D:]

    def heads(t):  # (B,S,D) -> (B,H,S,dh)
        return t.reshape(B, S, nhead, dh).transpose(0, 2, 1, 3)

    qh, kh, vh = heads(q), heads(k), heads(v)
    s = jnp.einsum("bhqd,bhkd->bhqk", qh, kh) / (dh ** 0.5)
    pattn = jax.nn.softmax(s, axis=-1)
    o = jnp.einsum("bhqk,bhkd->bhqd", pattn, vh)
    o = o.transpose(0, 2, 1, 3).reshape(B, S, D)
    x = x + (o @ p["out_proj_w"].T + p["out_proj_b"])

    h = ln(x) * p["ln2_g"] + p["ln2_b"]
    h = jnp.maximum(h @ p["ffn_w1"].T + p["ffn_b1"], 0.0)
    x = x + (h @ p["ffn_w2"].T + p["ffn_b2"])
    return x


if __name__ == "__main__":
    B, S, D, H, FF = 2, 8, 32, 4, 64  # small shapes consistent with the module

    key = jax.random.PRNGKey(0)
    k_p, k_x, k_t = jax.random.split(key, 3)
    params = init_params(k_p, d_model=D, nhead=H, dim_feedforward=FF)
    src = jax.random.normal(k_x, (B, S, D), jnp.float32)
    timestep = jnp.array([3.0, 7.0], jnp.float32)  # (B,)

    # One-time weight relayout / bf16 cast, hoisted out of the forward pass.
    weights = prepare_block_weights(params)
    weights = jax.block_until_ready(weights)

    out = block_forward(params, weights, src, timestep, H)
    out = jax.block_until_ready(out)

    ref = block_reference(params, src, timestep, H)
    assert out.shape == (B, S, D)
    err = float(jnp.max(jnp.abs(out - ref)))
    # Tolerance covers bf16 matmul operands + approximate EUP reciprocal.
    assert jnp.allclose(out, ref, atol=2e-2, rtol=2e-2), f"max err {err}"

    print("KERNEL_OK")
</pallas_src>

<mosaic_0001>
module attributes {stable_mosaic.version = 11 : i64} {
  func.func @block_kernel(%arg0: i32, %arg1: memref<2x8x32xf32, #tpu.memory_space<vmem>>, %arg2: memref<2x1x32xf32, #tpu.memory_space<vmem>>, %arg3: memref<2x1x32xf32, #tpu.memory_space<vmem>>, %arg4: memref<32x96xbf16, #tpu.memory_space<vmem>>, %arg5: memref<1x96xf32, #tpu.memory_space<vmem>>, %arg6: memref<32x32xbf16, #tpu.memory_space<vmem>>, %arg7: memref<1x32xf32, #tpu.memory_space<vmem>>, %arg8: memref<1x32xf32, #tpu.memory_space<vmem>>, %arg9: memref<1x32xf32, #tpu.memory_space<vmem>>, %arg10: memref<32x64xbf16, #tpu.memory_space<vmem>>, %arg11: memref<1x64xf32, #tpu.memory_space<vmem>>, %arg12: memref<64x32xbf16, #tpu.memory_space<vmem>>, %arg13: memref<1x32xf32, #tpu.memory_space<vmem>>, %arg14: memref<2x8x32xf32, #tpu.memory_space<vmem>>) attributes {dimension_semantics = [#tpu.dimension_semantics<parallel>], iteration_bounds = array<i64: 1>, scalar_prefetch = 0 : i64, scratch_operands = 0 : i64, tpu.core_type = #tpu.core_type<tc>, window_params = [{transform_indices = @transform_0, window_bounds = array<i64: 2, 8, 32>}, {transform_indices = @transform_1, window_bounds = array<i64: 2, 1, 32>}, {transform_indices = @transform_2, window_bounds = array<i64: 2, 1, 32>}, {pipeline_mode = #tpu.pipeline_mode<synchronous>, transform_indices = @transform_3, window_bounds = array<i64: 32, 96>}, {pipeline_mode = #tpu.pipeline_mode<synchronous>, transform_indices = @transform_4, window_bounds = array<i64: 1, 96>}, {pipeline_mode = #tpu.pipeline_mode<synchronous>, transform_indices = @transform_5, window_bounds = array<i64: 32, 32>}, {pipeline_mode = #tpu.pipeline_mode<synchronous>, transform_indices = @transform_6, window_bounds = array<i64: 1, 32>}, {pipeline_mode = #tpu.pipeline_mode<synchronous>, transform_indices = @transform_7, window_bounds = array<i64: 1, 32>}, {pipeline_mode = #tpu.pipeline_mode<synchronous>, transform_indices = @transform_8, window_bounds = array<i64: 1, 32>}, {pipeline_mode = #tpu.pipeline_mode<synchronous>, transform_indices = @transform_9, window_bounds = array<i64: 32, 64>}, {pipeline_mode = #tpu.pipeline_mode<synchronous>, transform_indices = @transform_10, window_bounds = array<i64: 1, 64>}, {pipeline_mode = #tpu.pipeline_mode<synchronous>, transform_indices = @transform_11, window_bounds = array<i64: 64, 32>}, {pipeline_mode = #tpu.pipeline_mode<synchronous>, transform_indices = @transform_12, window_bounds = array<i64: 1, 32>}, {transform_indices = @transform_13, window_bounds = array<i64: 2, 8, 32>}]} {
    %c0 = arith.constant 0 : index
    %c0_0 = arith.constant 0 : index
    %c0_1 = arith.constant 0 : index
    %0 = vector.load %arg1[%c0, %c0_0, %c0_1] : memref<2x8x32xf32, #tpu.memory_space<vmem>>, vector<2x8x32xf32>
    %cst = arith.constant dense<0.000000e+00> : vector<2x8xf32>
    %1 = vector.multi_reduction <add>, %0, %cst [2] : vector<2x8x32xf32> to vector<2x8xf32>
    %2 = vector.shape_cast %1 : vector<2x8xf32> to vector<2x8x1xf32>
    %cst_2 = arith.constant 3.200000e+01 : f32
    %3 = vector.broadcast %cst_2 : f32 to vector<2x8x1xf32>
    %4 = arith.divf %2, %3 : vector<2x8x1xf32>
    %5 = vector.broadcast %4 : vector<2x8x1xf32> to vector<2x8x32xf32>
    %6 = arith.subf %0, %5 : vector<2x8x32xf32>
    %7 = arith.mulf %6, %6 : vector<2x8x32xf32>
    %cst_3 = arith.constant dense<0.000000e+00> : vector<2x8xf32>
    %8 = vector.multi_reduction <add>, %7, %cst_3 [2] : vector<2x8x32xf32> to vector<2x8xf32>
    %9 = vector.shape_cast %8 : vector<2x8xf32> to vector<2x8x1xf32>
    %cst_4 = arith.constant 3.200000e+01 : f32
    %10 = vector.broadcast %cst_4 : f32 to vector<2x8x1xf32>
    %11 = arith.divf %9, %10 : vector<2x8x1xf32>
    %12 = vector.broadcast %4 : vector<2x8x1xf32> to vector<2x8x32xf32>
    %13 = arith.subf %0, %12 : vector<2x8x32xf32>
    %cst_5 = arith.constant 9.99999974E-6 : f32
    %14 = vector.broadcast %cst_5 : f32 to vector<2x8x1xf32>
    %15 = arith.addf %11, %14 : vector<2x8x1xf32>
    %16 = math.rsqrt %15 : vector<2x8x1xf32>
    %17 = vector.broadcast %16 : vector<2x8x1xf32> to vector<2x8x32xf32>
    %18 = arith.mulf %13, %17 : vector<2x8x32xf32>
    %c0_6 = arith.constant 0 : index
    %c0_7 = arith.constant 0 : index
    %c0_8 = arith.constant 0 : index
    %19 = vector.load %arg2[%c0_6, %c0_7, %c0_8] : memref<2x1x32xf32, #tpu.memory_space<vmem>>, vector<2x1x32xf32>
    %c0_9 = arith.constant 0 : index
    %c0_10 = arith.constant 0 : index
    %c0_11 = arith.constant 0 : index
    %20 = vector.load %arg3[%c0_9, %c0_10, %c0_11] : memref<2x1x32xf32, #tpu.memory_space<vmem>>, vector<2x1x32xf32>
    %cst_12 = arith.constant 1.000000e+00 : f32
    %21 = vector.broadcast %cst_12 : f32 to vector<2x1x32xf32>
    %22 = arith.addf %21, %19 : vector<2x1x32xf32>
    %23 = vector.broadcast %22 : vector<2x1x32xf32> to vector<2x8x32xf32>
    %24 = arith.mulf %18, %23 : vector<2x8x32xf32>
    %25 = vector.broadcast %20 : vector<2x1x32xf32> to vector<2x8x32xf32>
    %26 = arith.addf %24, %25 : vector<2x8x32xf32>
    %27 = vector.shape_cast %26 : vector<2x8x32xf32> to vector<16x32xf32>
    %28 = arith.truncf %27 : vector<16x32xf32> to vector<16x32xbf16>
    %c0_13 = arith.constant 0 : index
    %c0_14 = arith.constant 0 : index
    %29 = vector.load %arg4[%c0_13, %c0_14] : memref<32x96xbf16, #tpu.memory_space<vmem>>, vector<32x96xbf16>
    %cst_15 = arith.constant dense<0.000000e+00> : vector<16x96xf32>
    %30 = tpu.matmul %28, %29, %cst_15 {dimension_numbers = #tpu.dot_dimension_numbers<[1], [0], [0], [1], [0, 0, 1, 1], [], []>} : vector<16x32xbf16>, vector<32x96xbf16>, vector<16x96xf32> -> vector<16x96xf32>
    %c0_16 = arith.constant 0 : index
    %c0_17 = arith.constant 0 : index
    %31 = vector.load %arg5[%c0_16, %c0_17] : memref<1x96xf32, #tpu.memory_space<vmem>>, vector<1x96xf32>
    %32 = vector.broadcast %31 : vector<1x96xf32> to vector<16x96xf32>
    %33 = arith.addf %30, %32 : vector<16x96xf32>
    %34 = vector.extract_strided_slice %33 {offsets = [0, 0], sizes = [16, 32], strides = [1, 1]} : vector<16x96xf32> to vector<16x32xf32>
    %cst_18 = arith.constant 0.353553385 : f32
    %35 = vector.broadcast %cst_18 : f32 to vector<16x32xf32>
    %36 = arith.mulf %34, %35 : vector<16x32xf32>
    %37 = vector.extract_strided_slice %33 {offsets = [0, 32], sizes = [16, 32], strides = [1, 1]} : vector<16x96xf32> to vector<16x32xf32>
    %38 = vector.extract_strided_slice %33 {offsets = [0, 64], sizes = [16, 32], strides = [1, 1]} : vector<16x96xf32> to vector<16x32xf32>
    %39 = vector.extract_strided_slice %36 {offsets = [0, 0], sizes = [16, 8], strides = [1, 1]} : vector<16x32xf32> to vector<16x8xf32>
    %40 = vector.shape_cast %39 : vector<16x8xf32> to vector<2x8x8xf32>
    %41 = vector.extract_strided_slice %36 {offsets = [0, 8], sizes = [16, 8], strides = [1, 1]} : vector<16x32xf32> to vector<16x8xf32>
    %42 = vector.shape_cast %41 : vector<16x8xf32> to vector<2x8x8xf32>
    %43 = vector.extract_strided_slice %36 {offsets = [0, 16], sizes = [16, 8], strides = [1, 1]} : vector<16x32xf32> to vector<16x8xf32>
    %44 = vector.shape_cast %43 : vector<16x8xf32> to vector<2x8x8xf32>
    %45 = vector.extract_strided_slice %36 {offsets = [0, 24], sizes = [16, 8], strides = [1, 1]} : vector<16x32xf32> to vector<16x8xf32>
    %46 = vector.shape_cast %45 : vector<16x8xf32> to vector<2x8x8xf32>
    %47 = vector.shape_cast %40 : vector<2x8x8xf32> to vector<1x2x8x8xf32>
    %48 = vector.shape_cast %42 : vector<2x8x8xf32> to vector<1x2x8x8xf32>
    %49 = vector.shape_cast %44 : vector<2x8x8xf32> to vector<1x2x8x8xf32>
    %50 = vector.shape_cast %46 : vector<2x8x8xf32> to vector<1x2x8x8xf32>
    %51 = tpu.concatenate %47, %48, %49, %50 in 0 : vector<1x2x8x8xf32>, vector<1x2x8x8xf32>, vector<1x2x8x8xf32>, vector<1x2x8x8xf32> -> vector<4x2x8x8xf32>
    %52 = vector.shape_cast %51 : vector<4x2x8x8xf32> to vector<8x8x8xf32>
    %53 = arith.truncf %52 : vector<8x8x8xf32> to vector<8x8x8xbf16>
    %54 = vector.extract_strided_slice %37 {offsets = [0, 0], sizes = [16, 8], strides = [1, 1]} : vector<16x32xf32> to vector<16x8xf32>
    %55 = vector.shape_cast %54 : vector<16x8xf32> to vector<2x8x8xf32>
    %56 = vector.extract_strided_slice %37 {offsets = [0, 8], sizes = [16, 8], strides = [1, 1]} : vector<16x32xf32> to vector<16x8xf32>
    %57 = vector.shape_cast %56 : vector<16x8xf32> to vector<2x8x8xf32>
    %58 = vector.extract_strided_slice %37 {offsets = [0, 16], sizes = [16, 8], strides = [1, 1]} : vector<16x32xf32> to vector<16x8xf32>
    %59 = vector.shape_cast %58 : vector<16x8xf32> to vector<2x8x8xf32>
    %60 = vector.extract_strided_slice %37 {offsets = [0, 24], sizes = [16, 8], strides = [1, 1]} : vector<16x32xf32> to vector<16x8xf32>
    %61 = vector.shape_cast %60 : vector<16x8xf32> to vector<2x8x8xf32>
    %62 = vector.shape_cast %55 : vector<2x8x8xf32> to vector<1x2x8x8xf32>
    %63 = vector.shape_cast %57 : vector<2x8x8xf32> to vector<1x2x8x8xf32>
    %64 = vector.shape_cast %59 : vector<2x8x8xf32> to vector<1x2x8x8xf32>
    %65 = vector.shape_cast %61 : vector<2x8x8xf32> to vector<1x2x8x8xf32>
    %66 = tpu.concatenate %62, %63, %64, %65 in 0 : vector<1x2x8x8xf32>, vector<1x2x8x8xf32>, vector<1x2x8x8xf32>, vector<1x2x8x8xf32> -> vector<4x2x8x8xf32>
    %67 = vector.shape_cast %66 : vector<4x2x8x8xf32> to vector<8x8x8xf32>
    %68 = arith.truncf %67 : vector<8x8x8xf32> to vector<8x8x8xbf16>
    %69 = vector.extract_strided_slice %38 {offsets = [0, 0], sizes = [16, 8], strides = [1, 1]} : vector<16x32xf32> to vector<16x8xf32>
    %70 = vector.shape_cast %69 : vector<16x8xf32> to vector<2x8x8xf32>
    %71 = vector.extract_strided_slice %38 {offsets = [0, 8], sizes = [16, 8], strides = [1, 1]} : vector<16x32xf32> to vector<16x8xf32>
    %72 = vector.shape_cast %71 : vector<16x8xf32> to vector<2x8x8xf32>
    %73 = vector.extract_strided_slice %38 {offsets = [0, 16], sizes = [16, 8], strides = [1, 1]} : vector<16x32xf32> to vector<16x8xf32>
    %74 = vector.shape_cast %73 : vector<16x8xf32> to vector<2x8x8xf32>
    %75 = vector.extract_strided_slice %38 {offsets = [0, 24], sizes = [16, 8], strides = [1, 1]} : vector<16x32xf32> to vector<16x8xf32>
    %76 = vector.shape_cast %75 : vector<16x8xf32> to vector<2x8x8xf32>
    %77 = vector.shape_cast %70 : vector<2x8x8xf32> to vector<1x2x8x8xf32>
    %78 = vector.shape_cast %72 : vector<2x8x8xf32> to vector<1x2x8x8xf32>
    %79 = vector.shape_cast %74 : vector<2x8x8xf32> to vector<1x2x8x8xf32>
    %80 = vector.shape_cast %76 : vector<2x8x8xf32> to vector<1x2x8x8xf32>
    %81 = tpu.concatenate %77, %78, %79, %80 in 0 : vector<1x2x8x8xf32>, vector<1x2x8x8xf32>, vector<1x2x8x8xf32>, vector<1x2x8x8xf32> -> vector<4x2x8x8xf32>
    %82 = vector.shape_cast %81 : vector<4x2x8x8xf32> to vector<8x8x8xf32>
    %83 = arith.truncf %82 : vector<8x8x8xf32> to vector<8x8x8xbf16>
    "tpu.trace_start"() <{level = 10 : i32, message = "gqe,gke->gqk"}> : () -> ()
    %cst_19 = arith.constant dense<0.000000e+00> : vector<8x8x8xf32>
    %84 = tpu.matmul %53, %68, %cst_19 {dimension_numbers = #tpu.dot_dimension_numbers<[2], [2], [1], [1], [0, 0, 0, 1, 1, 1], [0], [0]>} : vector<8x8x8xbf16>, vector<8x8x8xbf16>, vector<8x8x8xf32> -> vector<8x8x8xf32>
    "tpu.trace_stop"() : () -> ()
    %cst_20 = arith.constant dense<0xFF800000> : vector<8x8xf32>
    %85 = vector.multi_reduction <maximumf>, %84, %cst_20 [2] : vector<8x8x8xf32> to vector<8x8xf32>
    %86 = vector.shape_cast %85 : vector<8x8xf32> to vector<8x8x1xf32>
    %87 = vector.broadcast %86 : vector<8x8x1xf32> to vector<8x8x8xf32>
    %88 = arith.subf %84, %87 : vector<8x8x8xf32>
    %89 = math.exp %88 : vector<8x8x8xf32>
    %cst_21 = arith.constant dense<0.000000e+00> : vector<8x8xf32>
    %90 = vector.multi_reduction <add>, %89, %cst_21 [2] : vector<8x8x8xf32> to vector<8x8xf32>
    %91 = vector.shape_cast %90 : vector<8x8xf32> to vector<8x8x1xf32>
    %92 = tpu.reciprocal %91 {approx = true} : vector<8x8x1xf32> -> vector<8x8x1xf32>
    %93 = vector.broadcast %92 : vector<8x8x1xf32> to vector<8x8x8xf32>
    %94 = arith.mulf %89, %93 : vector<8x8x8xf32>
    %95 = arith.truncf %94 : vector<8x8x8xf32> to vector<8x8x8xbf16>
    "tpu.trace_start"() <{level = 10 : i32, message = "gqk,gke->gqe"}> : () -> ()
    %cst_22 = arith.constant dense<0.000000e+00> : vector<8x8x8xf32>
    %96 = tpu.matmul %95, %83, %cst_22 {dimension_numbers = #tpu.dot_dimension_numbers<[2], [1], [1], [2], [0, 0, 0, 1, 1, 2], [0], [0]>} : vector<8x8x8xbf16>, vector<8x8x8xbf16>, vector<8x8x8xf32> -> vector<8x8x8xf32>
    "tpu.trace_stop"() : () -> ()
    %97 = vector.shape_cast %96 : vector<8x8x8xf32> to vector<4x2x8x8xf32>
    %98 = vector.extract_strided_slice %97 {offsets = [0, 0, 0, 0], sizes = [1, 2, 8, 8], strides = [1, 1, 1, 1]} : vector<4x2x8x8xf32> to vector<1x2x8x8xf32>
    %99 = vector.shape_cast %98 : vector<1x2x8x8xf32> to vector<2x8x8xf32>
    %100 = vector.extract_strided_slice %97 {offsets = [1, 0, 0, 0], sizes = [1, 2, 8, 8], strides = [1, 1, 1, 1]} : vector<4x2x8x8xf32> to vector<1x2x8x8xf32>
    %101 = vector.shape_cast %100 : vector<1x2x8x8xf32> to vector<2x8x8xf32>
    %102 = vector.extract_strided_slice %97 {offsets = [2, 0, 0, 0], sizes = [1, 2, 8, 8], strides = [1, 1, 1, 1]} : vector<4x2x8x8xf32> to vector<1x2x8x8xf32>
    %103 = vector.shape_cast %102 : vector<1x2x8x8xf32> to vector<2x8x8xf32>
    %104 = vector.extract_strided_slice %97 {offsets = [3, 0, 0, 0], sizes = [1, 2, 8, 8], strides = [1, 1, 1, 1]} : vector<4x2x8x8xf32> to vector<1x2x8x8xf32>
    %105 = vector.shape_cast %104 : vector<1x2x8x8xf32> to vector<2x8x8xf32>
    %106 = tpu.concatenate %99, %101, %103, %105 in 2 : vector<2x8x8xf32>, vector<2x8x8xf32>, vector<2x8x8xf32>, vector<2x8x8xf32> -> vector<2x8x32xf32>
    %107 = vector.shape_cast %106 : vector<2x8x32xf32> to vector<16x32xf32>
    %108 = arith.truncf %107 : vector<16x32xf32> to vector<16x32xbf16>
    %c0_23 = arith.constant 0 : index
    %c0_24 = arith.constant 0 : index
    %109 = vector.load %arg6[%c0_23, %c0_24] : memref<32x32xbf16, #tpu.memory_space<vmem>>, vector<32x32xbf16>
    %cst_25 = arith.constant dense<0.000000e+00> : vector<16x32xf32>
    %110 = tpu.matmul %108, %109, %cst_25 {dimension_numbers = #tpu.dot_dimension_numbers<[1], [0], [0], [1], [0, 0, 1, 1], [], []>} : vector<16x32xbf16>, vector<32x32xbf16>, vector<16x32xf32> -> vector<16x32xf32>
    %c0_26 = arith.constant 0 : index
    %c0_27 = arith.constant 0 : index
    %111 = vector.load %arg7[%c0_26, %c0_27] : memref<1x32xf32, #tpu.memory_space<vmem>>, vector<1x32xf32>
    %112 = vector.broadcast %111 : vector<1x32xf32> to vector<16x32xf32>
    %113 = arith.addf %110, %112 : vector<16x32xf32>
    %114 = arith.addf %27, %113 : vector<16x32xf32>
    %cst_28 = arith.constant dense<0.000000e+00> : vector<16xf32>
    %115 = vector.multi_reduction <add>, %114, %cst_28 [1] : vector<16x32xf32> to vector<16xf32>
    %116 = vector.shape_cast %115 : vector<16xf32> to vector<16x1xf32>
    %cst_29 = arith.constant 3.200000e+01 : f32
    %117 = vector.broadcast %cst_29 : f32 to vector<16x1xf32>
    %118 = arith.divf %116, %117 : vector<16x1xf32>
    %119 = vector.broadcast %118 : vector<16x1xf32> to vector<16x32xf32>
    %120 = arith.subf %114, %119 : vector<16x32xf32>
    %121 = arith.mulf %120, %120 : vector<16x32xf32>
    %cst_30 = arith.constant dense<0.000000e+00> : vector<16xf32>
    %122 = vector.multi_reduction <add>, %121, %cst_30 [1] : vector<16x32xf32> to vector<16xf32>
    %123 = vector.shape_cast %122 : vector<16xf32> to vector<16x1xf32>
    %cst_31 = arith.constant 3.200000e+01 : f32
    %124 = vector.broadcast %cst_31 : f32 to vector<16x1xf32>
    %125 = arith.divf %123, %124 : vector<16x1xf32>
    %126 = vector.broadcast %118 : vector<16x1xf32> to vector<16x32xf32>
    %127 = arith.subf %114, %126 : vector<16x32xf32>
    %cst_32 = arith.constant 9.99999974E-6 : f32
    %128 = vector.broadcast %cst_32 : f32 to vector<16x1xf32>
    %129 = arith.addf %125, %128 : vector<16x1xf32>
    %130 = math.rsqrt %129 : vector<16x1xf32>
    %131 = vector.broadcast %130 : vector<16x1xf32> to vector<16x32xf32>
    %132 = arith.mulf %127, %131 : vector<16x32xf32>
    %c0_33 = arith.constant 0 : index
    %c0_34 = arith.constant 0 : index
    %133 = vector.load %arg8[%c0_33, %c0_34] : memref<1x32xf32, #tpu.memory_space<vmem>>, vector<1x32xf32>
    %134 = vector.broadcast %133 : vector<1x32xf32> to vector<16x32xf32>
    %135 = arith.mulf %132, %134 : vector<16x32xf32>
    %c0_35 = arith.constant 0 : index
    %c0_36 = arith.constant 0 : index
    %136 = vector.load %arg9[%c0_35, %c0_36] : memref<1x32xf32, #tpu.memory_space<vmem>>, vector<1x32xf32>
    %137 = vector.broadcast %136 : vector<1x32xf32> to vector<16x32xf32>
    %138 = arith.addf %135, %137 : vector<16x32xf32>
    %139 = arith.truncf %138 : vector<16x32xf32> to vector<16x32xbf16>
    %c0_37 = arith.constant 0 : index
    %c0_38 = arith.constant 0 : index
    %140 = vector.load %arg10[%c0_37, %c0_38] : memref<32x64xbf16, #tpu.memory_space<vmem>>, vector<32x64xbf16>
    %cst_39 = arith.constant dense<0.000000e+00> : vector<16x64xf32>
    %141 = tpu.matmul %139, %140, %cst_39 {dimension_numbers = #tpu.dot_dimension_numbers<[1], [0], [0], [1], [0, 0, 1, 1], [], []>} : vector<16x32xbf16>, vector<32x64xbf16>, vector<16x64xf32> -> vector<16x64xf32>
    %c0_40 = arith.constant 0 : index
    %c0_41 = arith.constant 0 : index
    %142 = vector.load %arg11[%c0_40, %c0_41] : memref<1x64xf32, #tpu.memory_space<vmem>>, vector<1x64xf32>
    %143 = vector.broadcast %142 : vector<1x64xf32> to vector<16x64xf32>
    %144 = arith.addf %141, %143 : vector<16x64xf32>
    %cst_42 = arith.constant 0.000000e+00 : f32
    %145 = vector.broadcast %cst_42 : f32 to vector<16x64xf32>
    %146 = arith.maximumf %144, %145 : vector<16x64xf32>
    %147 = arith.truncf %146 : vector<16x64xf32> to vector<16x64xbf16>
    %c0_43 = arith.constant 0 : index
    %c0_44 = arith.constant 0 : index
    %148 = vector.load %arg12[%c0_43, %c0_44] : memref<64x32xbf16, #tpu.memory_space<vmem>>, vector<64x32xbf16>
    %cst_45 = arith.constant dense<0.000000e+00> : vector<16x32xf32>
    %149 = tpu.matmul %147, %148, %cst_45 {dimension_numbers = #tpu.dot_dimension_numbers<[1], [0], [0], [1], [0, 0, 1, 1], [], []>} : vector<16x64xbf16>, vector<64x32xbf16>, vector<16x32xf32> -> vector<16x32xf32>
    %c0_46 = arith.constant 0 : index
    %c0_47 = arith.constant 0 : index
    %150 = vector.load %arg13[%c0_46, %c0_47] : memref<1x32xf32, #tpu.memory_space<vmem>>, vector<1x32xf32>
    %151 = vector.broadcast %150 : vector<1x32xf32> to vector<16x32xf32>
    %152 = arith.addf %149, %151 : vector<16x32xf32>
    %153 = arith.addf %114, %152 : vector<16x32xf32>
    %154 = vector.shape_cast %153 : vector<16x32xf32> to vector<2x8x32xf32>
    %c0_48 = arith.constant 0 : index
    %c0_49 = arith.constant 0 : index
    %c0_50 = arith.constant 0 : index
    %155 = vector.load %arg14[%c0_48, %c0_49, %c0_50] : memref<2x8x32xf32, #tpu.memory_space<vmem>>, vector<2x8x32xf32>
    tpu.vector_store %arg14[%c0_48, %c0_49, %c0_50], %154 {strides = array<i32>} : memref<2x8x32xf32, #tpu.memory_space<vmem>>, vector<2x8x32xf32>,
    return
  }
  func.func @transform_0(%arg0: i32) -> (i32, i32, i32) {
    %c0_i32 = arith.constant 0 : i32
    %c0_i32_0 = arith.constant 0 : i32
    %c0_i32_1 = arith.constant 0 : i32
    return %arg0, %c0_i32, %c0_i32_0 : i32, i32, i32
  }
  func.func @transform_1(%arg0: i32) -> (i32, i32, i32) {
    %c0_i32 = arith.constant 0 : i32
    %c0_i32_0 = arith.constant 0 : i32
    %c0_i32_1 = arith.constant 0 : i32
    return %arg0, %c0_i32, %c0_i32_0 : i32, i32, i32
  }
  func.func @transform_2(%arg0: i32) -> (i32, i32, i32) {
    %c0_i32 = arith.constant 0 : i32
    %c0_i32_0 = arith.constant 0 : i32
    %c0_i32_1 = arith.constant 0 : i32
    return %arg0, %c0_i32, %c0_i32_0 : i32, i32, i32
  }
  func.func @transform_3(%arg0: i32) -> (i32, i32) {
    %c0_i32 = arith.constant 0 : i32
    %c0_i32_0 = arith.constant 0 : i32
    %c0_i32_1 = arith.constant 0 : i32
    return %c0_i32, %c0_i32_0 : i32, i32
  }
  func.func @transform_4(%arg0: i32) -> (i32, i32) {
    %c0_i32 = arith.constant 0 : i32
    %c0_i32_0 = arith.constant 0 : i32
    %c0_i32_1 = arith.constant 0 : i32
    return %c0_i32, %c0_i32_0 : i32, i32
  }
  func.func @transform_5(%arg0: i32) -> (i32, i32) {
    %c0_i32 = arith.constant 0 : i32
    %c0_i32_0 = arith.constant 0 : i32
    %c0_i32_1 = arith.constant 0 : i32
    return %c0_i32, %c0_i32_0 : i32, i32
  }
  func.func @transform_6(%arg0: i32) -> (i32, i32) {
    %c0_i32 = arith.constant 0 : i32
    %c0_i32_0 = arith.constant 0 : i32
    %c0_i32_1 = arith.constant 0 : i32
    return %c0_i32, %c0_i32_0 : i32, i32
  }
  func.func @transform_7(%arg0: i32) -> (i32, i32) {
    %c0_i32 = arith.constant 0 : i32
    %c0_i32_0 = arith.constant 0 : i32
    %c0_i32_1 = arith.constant 0 : i32
    return %c0_i32, %c0_i32_0 : i32, i32
  }
  func.func @transform_8(%arg0: i32) -> (i32, i32) {
    %c0_i32 = arith.constant 0 : i32
    %c0_i32_0 = arith.constant 0 : i32
    %c0_i32_1 = arith.constant 0 : i32
    return %c0_i32, %c0_i32_0 : i32, i32
  }
  func.func @transform_9(%arg0: i32) -> (i32, i32) {
    %c0_i32 = arith.constant 0 : i32
    %c0_i32_0 = arith.constant 0 : i32
    %c0_i32_1 = arith.constant 0 : i32
    return %c0_i32, %c0_i32_0 : i32, i32
  }
  func.func @transform_10(%arg0: i32) -> (i32, i32) {
    %c0_i32 = arith.constant 0 : i32
    %c0_i32_0 = arith.constant 0 : i32
    %c0_i32_1 = arith.constant 0 : i32
    return %c0_i32, %c0_i32_0 : i32, i32
  }
  func.func @transform_11(%arg0: i32) -> (i32, i32) {
    %c0_i32 = arith.constant 0 : i32
    %c0_i32_0 = arith.constant 0 : i32
    %c0_i32_1 = arith.constant 0 : i32
    return %c0_i32, %c0_i32_0 : i32, i32
  }
  func.func @transform_12(%arg0: i32) -> (i32, i32) {
    %c0_i32 = arith.constant 0 : i32
    %c0_i32_0 = arith.constant 0 : i32
    %c0_i32_1 = arith.constant 0 : i32
    return %c0_i32, %c0_i32_0 : i32, i32
  }
  func.func @transform_13(%arg0: i32) -> (i32, i32, i32) {
    %c0_i32 = arith.constant 0 : i32
    %c0_i32_0 = arith.constant 0 : i32
    %c0_i32_1 = arith.constant 0 : i32
    return %arg0, %c0_i32, %c0_i32_0 : i32, i32, i32
  }
}

</mosaic_0001>

<llo_original>
// kernel: tpu_custom_call.1
$region0: #{tpu_custom_call.1}
  #allocation0 [shape = 'u32[]', space=smem, size = 0x4, offset = 0x4, fixed_abs, tag = 'smem constant byte address 0x4 - core index']
  #allocation1 [shape = 'u32[72,128]{1,0:T(1,128)}', space=vmem, size = 0x9000, scoped, tag = 'internal scratch']
  %s0 = inlined_call_operand.vmem [shape: f32[2,8,32], index: 0, kind: input, shape index: {}]
  %s1 = inlined_call_operand.hbm [shape: f32[2,1,32], index: 1, kind: input, shape index: {}]
  %s2 = inlined_call_operand.hbm [shape: f32[2,1,32], index: 2, kind: input, shape index: {}]
  %s3 = inlined_call_operand.vmem [shape: bf16[32,96], index: 3, kind: input, shape index: {}]
  %s4 = inlined_call_operand.vmem [shape: f32[1,96], index: 4, kind: input, shape index: {}]
  %s5 = inlined_call_operand.vmem [shape: bf16[32,32], index: 5, kind: input, shape index: {}]
  %s6 = inlined_call_operand.vmem [shape: f32[1,32], index: 6, kind: input, shape index: {}]
  %s7 = inlined_call_operand.vmem [shape: f32[1,32], index: 7, kind: input, shape index: {}]
  %s8 = inlined_call_operand.vmem [shape: f32[1,32], index: 8, kind: input, shape index: {}]
  %s9 = inlined_call_operand.hbm [shape: bf16[32,64], index: 9, kind: input, shape index: {}]
  %s10 = inlined_call_operand.vmem [shape: f32[1,64], index: 10, kind: input, shape index: {}]
  %s11 = inlined_call_operand.vmem [shape: bf16[64,32], index: 11, kind: input, shape index: {}]
  %s12 = inlined_call_operand.vmem [shape: f32[1,32], index: 12, kind: input, shape index: {}]
  %s13 = inlined_call_operand.hbm [shape: f32[2,8,32], index: 13, kind: output, shape index: {}]
  %s14 = sld [smem:[#allocation0]]
  $region74: #{tpu_custom_call.1} parent=0
    _
  %s16 = ssub.s32 1, %s14
  %s17 = scalar_select 0, %s16, %s14
  $region1: #{tpu_custom_call.1} parent=0
    #allocation2 [shape = 'u8[1024]{0}', space=vmem, size = 0x400, scoped, tag = 'input window, operand 1, single buffered']
    #allocation3 [shape = 's32[1]{0}', space=sflag, size = 0x4, scoped, tag = 'scoped memory for tpu_custom_call.1']
    #allocation4 [shape = 's32[1]{0}', space=sflag, size = 0x4, scoped, tag = 'scoped memory for tpu_custom_call.1']
    #allocation5 [shape = 'u8[1024]{0}', space=vmem, size = 0x400, scoped, tag = 'input window, operand 2, single buffered']
    #allocation6 [shape = 's32[1]{0}', space=sflag, size = 0x4, scoped, tag = 'scoped memory for tpu_custom_call.1']
    #allocation7 [shape = 'u8[8192]{0}', space=vmem, size = 0x2000, scoped, tag = 'input window, operand 9, single buffered']
    #allocation8 [shape = 'u8[8192]{0}', space=vmem, size = 0x2000, scoped, tag = 'output window, operand 0, single buffered']
    %18 = vsyncpa [#allocation3], 0
    %19 = vsyncpa [#allocation6], 0
    %20 = vsyncpa [#allocation4], 0
    // Predicated region
    $region2: #{tpu_custom_call.1} parent=1 // pred_check
      _
    $region3: #{tpu_custom_call.1} parent=1 // pred_check_branch
      %22 = sbr.rel (0) target = $region5
    $region4: #{tpu_custom_call.1} parent=1 // pred_region
      _
    $region5: #{tpu_custom_call.1} parent=1 // pred_fallthru
      _
    // Predicated region
    $region6: #{tpu_custom_call.1} parent=1 // pred_check
      _
    $region7: #{tpu_custom_call.1} parent=1 // pred_check_branch
      %24 = sbr.rel (0) target = $region9
    $region8: #{tpu_custom_call.1} parent=1 // pred_region
      %26 = vsyncadd [#allocation3], 0
      %s27 = sshll.u32 %s1, 4
      %s28 = int_to_ptr.hbm [resolvable:$true] %s27
      %s29 = sshll.u32 [#allocation2], 4
      %s30 = int_to_ptr.vmem [resolvable:$true] %s29
      %35 = dma.hbm_to_vmem [thread:$0]  %s28, 32, %s30, [#allocation3], 16, 16, 1
    $region9: #{tpu_custom_call.1} parent=1 // pred_fallthru
      _
    // Predicated region
    $region10: #{tpu_custom_call.1} parent=1 // pred_check
      _
    $region11: #{tpu_custom_call.1} parent=1 // pred_check_branch
      %37 = sbr.rel (0) target = $region13
    $region12: #{tpu_custom_call.1} parent=1 // pred_region
      %39 = vsyncadd [#allocation6], 0
      %s40 = sshll.u32 %s2, 4
      %s41 = int_to_ptr.hbm [resolvable:$true] %s40
      %s42 = sshll.u32 [#allocation5], 4
      %s43 = int_to_ptr.vmem [resolvable:$true] %s42
      %48 = dma.hbm_to_vmem [thread:$0]  %s41, 32, %s43, [#allocation6], 16, 16, 1
    $region13: #{tpu_custom_call.1} parent=1 // pred_fallthru
      _
    // Predicated region
    $region14: #{tpu_custom_call.1} parent=1 // pred_check
      _
    $region15: #{tpu_custom_call.1} parent=1 // pred_check_branch
      %50 = sbr.rel (0) target = $region17
    $region16: #{tpu_custom_call.1} parent=1 // pred_region
      _
    $region17: #{tpu_custom_call.1} parent=1 // pred_fallthru
      _
    // Predicated region
    $region18: #{tpu_custom_call.1} parent=1 // pred_check
      _
    $region19: #{tpu_custom_call.1} parent=1 // pred_check_branch
      %52 = sbr.rel (0) target = $region21
    $region20: #{tpu_custom_call.1} parent=1 // pred_region
      _
    $region21: #{tpu_custom_call.1} parent=1 // pred_fallthru
      _
    // Predicated region
    $region22: #{tpu_custom_call.1} parent=1 // pred_check
      _
    $region23: #{tpu_custom_call.1} parent=1 // pred_check_branch
      %54 = sbr.rel (0) target = $region25
    $region24: #{tpu_custom_call.1} parent=1 // pred_region
      _
    $region25: #{tpu_custom_call.1} parent=1 // pred_fallthru
      _
    // Predicated region
    $region26: #{tpu_custom_call.1} parent=1 // pred_check
      _
    $region27: #{tpu_custom_call.1} parent=1 // pred_check_branch
      %56 = sbr.rel (0) target = $region29
    $region28: #{tpu_custom_call.1} parent=1 // pred_region
      _
    $region29: #{tpu_custom_call.1} parent=1 // pred_fallthru
      _
    // Predicated region
    $region30: #{tpu_custom_call.1} parent=1 // pred_check
      _
    $region31: #{tpu_custom_call.1} parent=1 // pred_check_branch
      %58 = sbr.rel (0) target = $region33
    $region32: #{tpu_custom_call.1} parent=1 // pred_region
      _
    $region33: #{tpu_custom_call.1} parent=1 // pred_fallthru
      _
    // Predicated region
    $region34: #{tpu_custom_call.1} parent=1 // pred_check
      _
    $region35: #{tpu_custom_call.1} parent=1 // pred_check_branch
      %60 = sbr.rel (0) target = $region37
    $region36: #{tpu_custom_call.1} parent=1 // pred_region
      _
    $region37: #{tpu_custom_call.1} parent=1 // pred_fallthru
      _
    // Predicated region
    $region38: #{tpu_custom_call.1} parent=1 // pred_check
      _
    $region39: #{tpu_custom_call.1} parent=1 // pred_check_branch
      %62 = sbr.rel (0) target = $region41
    $region40: #{tpu_custom_call.1} parent=1 // pred_region
      %64 = vsyncadd [#allocation6], 0
      %s65 = sshll.u32 %s9, 4
      %s66 = int_to_ptr.hbm [resolvable:$true] %s65
      %s67 = sshll.u32 [#allocation7], 4
      %s68 = int_to_ptr.vmem [resolvable:$true] %s67
      %73 = dma.hbm_to_vmem [thread:$0]  %s66, 256, %s68, [#allocation6], 64, 64, 4
    $region41: #{tpu_custom_call.1} parent=1 // pred_fallthru
      _
    // Predicated region
    $region42: #{tpu_custom_call.1} parent=1 // pred_check
      _
    $region43: #{tpu_custom_call.1} parent=1 // pred_check_branch
      %75 = sbr.rel (0) target = $region45
    $region44: #{tpu_custom_call.1} parent=1 // pred_region
      _
    $region45: #{tpu_custom_call.1} parent=1 // pred_fallthru
      _
    // Predicated region
    $region46: #{tpu_custom_call.1} parent=1 // pred_check
      _
    $region47: #{tpu_custom_call.1} parent=1 // pred_check_branch
      %77 = sbr.rel (0) target = $region49
    $region48: #{tpu_custom_call.1} parent=1 // pred_region
      _
    $region49: #{tpu_custom_call.1} parent=1 // pred_fallthru
      _
    // Predicated region
    $region50: #{tpu_custom_call.1} parent=1 // pred_check
      _
    $region51: #{tpu_custom_call.1} parent=1 // pred_check_branch
      %79 = sbr.rel (0) target = $region53
    $region52: #{tpu_custom_call.1} parent=1 // pred_region
      _
    $region53: #{tpu_custom_call.1} parent=1 // pred_fallthru
      _
    // Predicated region
    $region54: #{tpu_custom_call.1} parent=1 // pred_check
      _
    $region55: #{tpu_custom_call.1} parent=1 // pred_check_branch
      %81 = sbr.rel (0) target = $region57
    $region56: #{tpu_custom_call.1} parent=1 // pred_region
      %83 = dma.done [#allocation3], 32
    $region57: #{tpu_custom_call.1} parent=1 // pred_fallthru
      _
    // Predicated region
    $region58: #{tpu_custom_call.1} parent=1 // pred_check
      _
    $region59: #{tpu_custom_call.1} parent=1 // pred_check_branch
      %85 = sbr.rel (0) target = $region61
    $region60: #{tpu_custom_call.1} parent=1 // pred_region
      %87 = dma.done [#allocation6], 32
    $region61: #{tpu_custom_call.1} parent=1 // pred_fallthru
      _
    // Predicated region
    $region62: #{tpu_custom_call.1} parent=1 // pred_check
      _
    $region63: #{tpu_custom_call.1} parent=1 // pred_check_branch
      %89 = sbr.rel (0) target = $region65
    $region64: #{tpu_custom_call.1} parent=1 // pred_region
      %91 = dma.done [#allocation6], 256
    $region65: #{tpu_custom_call.1} parent=1 // pred_fallthru
      _
    %v93 = vld [vmem:[%s0] sm:$0xff]
    %v94 = vld [vmem:[%s0 + $0x8] sm:$0xff]
    %vm95 = vcmask 261120
    %v96 = vsel %vm95, %v93, 0.0
    %97 = vadd.xlane.f32.xlu0 %v96
    %v98 = vpop.xlane.xlu0 %97
    %v99 = vsel %vm95, %v94, 0.0
    %100 = vadd.xlane.f32.xlu0 %v99
    %v101 = vpop.xlane.xlu0 %100
    %v102 = vrcp.pop 32.0
    %v103 = vmul.f32 32.0, %v102
    %v104 = vsub.f32 1.0, %v103
    %v105 = vmul.f32 %v102, %v104
    %v106 = vadd.f32 %v102, %v105
    %vm107 = vweird.f32 %v102
    %v108 = vsel %vm107, %v102, %v106
    %v109 = vmul.f32 %v98, %v108
    %v110 = vmul.f32 %v101, %v108
    %v111 = vsub.f32 %v93, %v109
    %v112 = vsub.f32 %v94, %v110
    %v113 = vmul.f32 %v111, %v111
    %v114 = vmul.f32 %v112, %v112
    %v115 = vsel %vm95, %v113, 0.0
    %116 = vadd.xlane.f32.xlu0 %v115
    %v117 = vpop.xlane.xlu0 %116
    %v118 = vsel %vm95, %v114, 0.0
    %119 = vadd.xlane.f32.xlu0 %v118
    %v120 = vpop.xlane.xlu0 %119
    %v121 = vmul.f32 %v117, %v108
    %v122 = vmul.f32 %v120, %v108
    %v123 = vadd.f32 %v121, 1e-05
    %v124 = vadd.f32 %v122, 1e-05
    %v125 = vrsqrt.pop %v123
    %v126 = vmul.f32 %v125, %v123
    %v127 = vmul.f32 %v126, %v125
    %v128 = vmul.f32 0.5, %v127
    %v129 = vsub.f32 1.5, %v128
    %v130 = vmul.f32 %v125, %v129
    %vm131 = vweird.f32 %v123
    %vm132 = vweird.f32 %v125
    %vm133 = vmor %vm131, %vm132
    %v134 = vsel %vm133, %v125, %v130
    %v135 = vrsqrt.pop %v124
    %v136 = vmul.f32 %v135, %v124
    %v137 = vmul.f32 %v136, %v135
    %v138 = vmul.f32 0.5, %v137
    %v139 = vsub.f32 1.5, %v138
    %v140 = vmul.f32 %v135, %v139
    %vm141 = vweird.f32 %v124
    %vm142 = vweird.f32 %v135
    %vm143 = vmor %vm141, %vm142
    %v144 = vsel %vm143, %v135, %v140
    %v145 = vmul.f32 %v111, %v134
    %v146 = vmul.f32 %v112, %v144
    %v147 = vld [vmem:[#allocation2] sm:$0x1]
    %v148 = vld [vmem:[#allocation2 + $0x1] sm:$0x1]
    %v149 = vld [vmem:[#allocation5] sm:$0x1]
    %v150 = vld [vmem:[#allocation5 + $0x1] sm:$0x1]
    %v151 = vadd.f32 %v147, 1.0
    %v152 = vadd.f32 %v148, 1.0
    %v155 = vperm.slane %v151, 0
    %v156 = vperm.slane %v152, 0
    %v159 = vmul.f32 %v145, %v155
    %v160 = vmul.f32 %v146, %v156
    %v163 = vperm.slane %v149, 0
    %v164 = vperm.slane %v150, 0
    %v167 = vadd.f32 %v159, %v163
    %v168 = vadd.f32 %v160, %v164
    %v169 = vpack.c.bf16 %v168, %v167
    %v170 = vld [vmem:[%s3] sm:$0xf]
    %v171 = vld [vmem:[%s3 + $0x4] sm:$0xf]
    %v172 = vld [vmem:[%s3 + $0x8] sm:$0xf]
    %v173 = vld [vmem:[%s3 + $0xc] sm:$0xf]
    %v174 = vld [vmem:[%s4] sm:$0x1]
    %v176 = vperm.slane %v174, 0
    %v182 = vunpack.c.l.b16 %v170
    %v183 = vunpack.c.l.b16 %v171
    %v184 = vunpack.c.l.b16 %v172
    %v185 = vunpack.c.l.b16 %v173
    %v186 = vpack.c.b16 %v183, %v182
    %v187 = vpack.c.b16 %v185, %v184
    %v191 = vsel %vm95, %v169, 0
    %193 = vmatpush.bf16.msra.mxu0 0
    %194 = vmatpush.bf16.msra.mxu0 0
    %195 = vmatpush.bf16.msra.mxu0 0
    %196 = vmatpush.bf16.msra.mxu0 0
    %197 = vmatpush.bf16.msra.mxu0 0
    %198 = vmatpush.bf16.msra.mxu0 0
    %199 = vmatpush.bf16.msra.mxu0 %v187
    %200 = vmatpush.bf16.msra.mxu0 %v186
    %201 = vmatmul.bf16.gmra.mxu0 %v191
    %v202 = vpop.f32.mrf.mxu0
    %v203 = vadd.f32 %v176, %v202
    %v204 = vpop.f32.mrf.mxu0
    %v205 = vadd.f32 %v176, %v204
    %206 = vdwg.mxu0
    %v207 = vmul.f32 %v203, 0.35355338
    %v208 = vmul.f32 %v205, 0.35355338
    %211 = vrot.lane.b32.xlu0 %v207, 120
    %v212 = vpop.permute.xlu0 %211
    %213 = vrot.lane.b32.xlu0 %v208, 120
    %v214 = vpop.permute.xlu0 %213
    %217 = vrot.lane.b32.xlu0 %v207, 112
    %v218 = vpop.permute.xlu0 %217
    %219 = vrot.lane.b32.xlu0 %v208, 112
    %v220 = vpop.permute.xlu0 %219
    %223 = vrot.lane.b32.xlu0 %v207, 104
    %v224 = vpop.permute.xlu0 %223
    %225 = vrot.lane.b32.xlu0 %v208, 104
    %v226 = vpop.permute.xlu0 %225
    %v229 = vpack.c.bf16 %v207, %v207
    %v230 = vpack.c.bf16 %v208, %v208
    %v231 = vpack.c.bf16 %v212, %v212
    %v232 = vpack.c.bf16 %v214, %v214
    %v233 = vpack.c.bf16 %v218, %v218
    %v234 = vpack.c.bf16 %v220, %v220
    %v235 = vpack.c.bf16 %v224, %v224
    %v236 = vpack.c.bf16 %v226, %v226
    %239 = vrot.lane.b32.xlu0 %v203, 120
    %v240 = vpop.permute.xlu0 %239
    %241 = vrot.lane.b32.xlu0 %v205, 120
    %v242 = vpop.permute.xlu0 %241
    %245 = vrot.lane.b32.xlu0 %v203, 112
    %v246 = vpop.permute.xlu0 %245
    %247 = vrot.lane.b32.xlu0 %v205, 112
    %v248 = vpop.permute.xlu0 %247
    %251 = vrot.lane.b32.xlu0 %v203, 104
    %v252 = vpop.permute.xlu0 %251
    %253 = vrot.lane.b32.xlu0 %v205, 104
    %v254 = vpop.permute.xlu0 %253
    %v257 = vpack.c.bf16 %v203, %v203
    %v258 = vpack.c.bf16 %v205, %v205
    %v259 = vpack.c.bf16 %v240, %v240
    %v260 = vpack.c.bf16 %v242, %v242
    %v261 = vpack.c.bf16 %v246, %v246
    %v262 = vpack.c.bf16 %v248, %v248
    %v263 = vpack.c.bf16 %v252, %v252
    %v264 = vpack.c.bf16 %v254, %v254
    %v266 = vunpack.c.l.b16 %v257
    %v267 = vpack.c.b16 %v266, %v266
    %268 = vrot.lane.b32.xlu0 %v267, 96
    %v269 = vpop.permute.xlu0 %268
    %vm270 = vcmask 64512
    %v272 = vsel %vm270, %v229, 0
    %v275 = vsel %vm270, %v269, 0
    %277 = vmatpush.bf16.xpose.msra.mxu0 0
    %278 = vmatpush.bf16.xpose.msra.mxu0 0
    %279 = vmatpush.bf16.xpose.msra.mxu0 0
    %280 = vmatpush.bf16.xpose.msra.mxu0 0
    %281 = vmatpush.bf16.xpose.msra.mxu0 0
    %282 = vmatpush.bf16.xpose.msra.mxu0 0
    %283 = vmatpush.bf16.xpose.msra.mxu0 0
    %284 = vmatpush.bf16.xpose.msra.mxu0 %v275
    %285 = vmatmul.bf16.gmra.mxu0 %v272
    %v286 = vpop.f32.mrf.mxu0
    %v287 = vadd.f32 0.0, %v286
    %v288 = vpop.f32.mrf.mxu0
    %289 = vdwg.mxu0
    %v291 = vunpack.c.l.b16 %v258
    %v292 = vpack.c.b16 %v291, %v291
    %293 = vrot.lane.b32.xlu0 %v292, 96
    %v294 = vpop.permute.xlu0 %293
    %v296 = vsel %vm270, %v230, 0
    %v299 = vsel %vm270, %v294, 0
    %301 = vmatpush.bf16.xpose.msra.mxu0 0
    %302 = vmatpush.bf16.xpose.msra.mxu0 0
    %303 = vmatpush.bf16.xpose.msra.mxu0 0
    %304 = vmatpush.bf16.xpose.msra.mxu0 0
    %305 = vmatpush.bf16.xpose.msra.mxu0 0
    %306 = vmatpush.bf16.xpose.msra.mxu0 0
    %307 = vmatpush.bf16.xpose.msra.mxu0 0
    %308 = vmatpush.bf16.xpose.msra.mxu0 %v299
    %309 = vmatmul.bf16.gmra.mxu0 %v296
    %v310 = vpop.f32.mrf.mxu0
    %v311 = vadd.f32 0.0, %v310
    %v312 = vpop.f32.mrf.mxu0
    %313 = vdwg.mxu0
    %v315 = vunpack.c.l.b16 %v259
    %v316 = vpack.c.b16 %v315, %v315
    %317 = vrot.lane.b32.xlu0 %v316, 96
    %v318 = vpop.permute.xlu0 %317
    %v320 = vsel %vm270, %v231, 0
    %v323 = vsel %vm270, %v318, 0
    %325 = vmatpush.bf16.xpose.msra.mxu0 0
    %326 = vmatpush.bf16.xpose.msra.mxu0 0
    %327 = vmatpush.bf16.xpose.msra.mxu0 0
    %328 = vmatpush.bf16.xpose.msra.mxu0 0
    %329 = vmatpush.bf16.xpose.msra.mxu0 0
    %330 = vmatpush.bf16.xpose.msra.mxu0 0
    %331 = vmatpush.bf16.xpose.msra.mxu0 0
    %332 = vmatpush.bf16.xpose.msra.mxu0 %v323
    %333 = vmatmul.bf16.gmra.mxu0 %v320
    %v334 = vpop.f32.mrf.mxu0
    %v335 = vadd.f32 0.0, %v334
    %v336 = vpop.f32.mrf.mxu0
    %337 = vdwg.mxu0
    %v339 = vunpack.c.l.b16 %v260
    %v340 = vpack.c.b16 %v339, %v339
    %341 = vrot.lane.b32.xlu0 %v340, 96
    %v342 = vpop.permute.xlu0 %341
    %v344 = vsel %vm270, %v232, 0
    %v347 = vsel %vm270, %v342, 0
    %349 = vmatpush.bf16.xpose.msra.mxu0 0
    %350 = vmatpush.bf16.xpose.msra.mxu0 0
    %351 = vmatpush.bf16.xpose.msra.mxu0 0
    %352 = vmatpush.bf16.xpose.msra.mxu0 0
    %353 = vmatpush.bf16.xpose.msra.mxu0 0
    %354 = vmatpush.bf16.xpose.msra.mxu0 0
    %355 = vmatpush.bf16.xpose.msra.mxu0 0
    %356 = vmatpush.bf16.xpose.msra.mxu0 %v347
    %357 = vmatmul.bf16.gmra.mxu0 %v344
    %v358 = vpop.f32.mrf.mxu0
    %v359 = vadd.f32 0.0, %v358
    %v360 = vpop.f32.mrf.mxu0
    %361 = vdwg.mxu0
    %v363 = vunpack.c.l.b16 %v261
    %v364 = vpack.c.b16 %v363, %v363
    %365 = vrot.lane.b32.xlu0 %v364, 96
    %v366 = vpop.permute.xlu0 %365
    %v368 = vsel %vm270, %v233, 0
    %v371 = vsel %vm270, %v366, 0
    %373 = vmatpush.bf16.xpose.msra.mxu0 0
    %374 = vmatpush.bf16.xpose.msra.mxu0 0
    %375 = vmatpush.bf16.xpose.msra.mxu0 0
    %376 = vmatpush.bf16.xpose.msra.mxu0 0
    %377 = vmatpush.bf16.xpose.msra.mxu0 0
    %378 = vmatpush.bf16.xpose.msra.mxu0 0
    %379 = vmatpush.bf16.xpose.msra.mxu0 0
    %380 = vmatpush.bf16.xpose.msra.mxu0 %v371
    %381 = vmatmul.bf16.gmra.mxu0 %v368
    %v382 = vpop.f32.mrf.mxu0
    %v383 = vadd.f32 0.0, %v382
    %v384 = vpop.f32.mrf.mxu0
    %385 = vdwg.mxu0
    %v387 = vunpack.c.l.b16 %v262
    %v388 = vpack.c.b16 %v387, %v387
    %389 = vrot.lane.b32.xlu0 %v388, 96
    %v390 = vpop.permute.xlu0 %389
    %v392 = vsel %vm270, %v234, 0
    %v395 = vsel %vm270, %v390, 0
    %397 = vmatpush.bf16.xpose.msra.mxu0 0
    %398 = vmatpush.bf16.xpose.msra.mxu0 0
    %399 = vmatpush.bf16.xpose.msra.mxu0 0
    %400 = vmatpush.bf16.xpose.msra.mxu0 0
    %401 = vmatpush.bf16.xpose.msra.mxu0 0
    %402 = vmatpush.bf16.xpose.msra.mxu0 0
    %403 = vmatpush.bf16.xpose.msra.mxu0 0
    %404 = vmatpush.bf16.xpose.msra.mxu0 %v395
    %405 = vmatmul.bf16.gmra.mxu0 %v392
    %v406 = vpop.f32.mrf.mxu0
    %v407 = vadd.f32 0.0, %v406
    %v408 = vpop.f32.mrf.mxu0
    %409 = vdwg.mxu0
    %v411 = vunpack.c.l.b16 %v263
    %v412 = vpack.c.b16 %v411, %v411
    %413 = vrot.lane.b32.xlu0 %v412, 96
    %v414 = vpop.permute.xlu0 %413
    %v416 = vsel %vm270, %v235, 0
    %v419 = vsel %vm270, %v414, 0
    %421 = vmatpush.bf16.xpose.msra.mxu0 0
    %422 = vmatpush.bf16.xpose.msra.mxu0 0
    %423 = vmatpush.bf16.xpose.msra.mxu0 0
    %424 = vmatpush.bf16.xpose.msra.mxu0 0
    %425 = vmatpush.bf16.xpose.msra.mxu0 0
    %426 = vmatpush.bf16.xpose.msra.mxu0 0
    %427 = vmatpush.bf16.xpose.msra.mxu0 0
    %428 = vmatpush.bf16.xpose.msra.mxu0 %v419
    %429 = vmatmul.bf16.gmra.mxu0 %v416
    %v430 = vpop.f32.mrf.mxu0
    %v431 = vadd.f32 0.0, %v430
    %v432 = vpop.f32.mrf.mxu0
    %433 = vdwg.mxu0
    %v435 = vunpack.c.l.b16 %v264
    %v436 = vpack.c.b16 %v435, %v435
    %437 = vrot.lane.b32.xlu0 %v436, 96
    %v438 = vpop.permute.xlu0 %437
    %v440 = vsel %vm270, %v236, 0
    %v443 = vsel %vm270, %v438, 0
    %445 = vmatpush.bf16.xpose.msra.mxu0 0
    %446 = vmatpush.bf16.xpose.msra.mxu0 0
    %447 = vmatpush.bf16.xpose.msra.mxu0 0
    %448 = vmatpush.bf16.xpose.msra.mxu0 0
    %449 = vmatpush.bf16.xpose.msra.mxu0 0
    %450 = vmatpush.bf16.xpose.msra.mxu0 0
    %451 = vmatpush.bf16.xpose.msra.mxu0 0
    %452 = vmatpush.bf16.xpose.msra.mxu0 %v443
    %453 = vmatmul.bf16.gmra.mxu0 %v440
    %v454 = vpop.f32.mrf.mxu0
    %v455 = vadd.f32 0.0, %v454
    %v456 = vpop.f32.mrf.mxu0
    %457 = vdwg.mxu0
    %v458 = vsel %vm270, %v287, -inf
    %459 = vmax.xlane.f32.xlu0 %v458
    %v460 = vpop.xlane.xlu0 %459
    %v461 = vsel %vm270, %v311, -inf
    %462 = vmax.xlane.f32.xlu0 %v461
    %v463 = vpop.xlane.xlu0 %462
    %v464 = vsel %vm270, %v335, -inf
    %465 = vmax.xlane.f32.xlu0 %v464
    %v466 = vpop.xlane.xlu0 %465
    %v467 = vsel %vm270, %v359, -inf
    %468 = vmax.xlane.f32.xlu0 %v467
    %v469 = vpop.xlane.xlu0 %468
    %v470 = vsel %vm270, %v383, -inf
    %471 = vmax.xlane.f32.xlu0 %v470
    %v472 = vpop.xlane.xlu0 %471
    %v473 = vsel %vm270, %v407, -inf
    %474 = vmax.xlane.f32.xlu0 %v473
    %v475 = vpop.xlane.xlu0 %474
    %v476 = vsel %vm270, %v431, -inf
    %477 = vmax.xlane.f32.xlu0 %v476
    %v478 = vpop.xlane.xlu0 %477
    %v479 = vsel %vm270, %v455, -inf
    %480 = vmax.xlane.f32.xlu0 %v479
    %v481 = vpop.xlane.xlu0 %480
    %v482 = vsub.f32 %v287, %v460
    %v483 = vsub.f32 %v311, %v463
    %v484 = vsub.f32 %v335, %v466
    %v485 = vsub.f32 %v359, %v469
    %v486 = vsub.f32 %v383, %v472
    %v487 = vsub.f32 %v407, %v475
    %v488 = vsub.f32 %v431, %v478
    %v489 = vsub.f32 %v455, %v481
    %v490 = vmul.f32 %v482, 1.442695
    %v491 = vpow.pop %v490
    %v492 = vmul.f32 %v483, 1.442695
    %v493 = vpow.pop %v492
    %v494 = vmul.f32 %v484, 1.442695
    %v495 = vpow.pop %v494
    %v496 = vmul.f32 %v485, 1.442695
    %v497 = vpow.pop %v496
    %v498 = vmul.f32 %v486, 1.442695
    %v499 = vpow.pop %v498
    %v500 = vmul.f32 %v487, 1.442695
    %v501 = vpow.pop %v500
    %v502 = vmul.f32 %v488, 1.442695
    %v503 = vpow.pop %v502
    %v504 = vmul.f32 %v489, 1.442695
    %v505 = vpow.pop %v504
    %v506 = vsel %vm270, %v491, 0.0
    %507 = vadd.xlane.f32.xlu0 %v506
    %v508 = vpop.xlane.xlu0 %507
    %v509 = vsel %vm270, %v493, 0.0
    %510 = vadd.xlane.f32.xlu0 %v509
    %v511 = vpop.xlane.xlu0 %510
    %v512 = vsel %vm270, %v495, 0.0
    %513 = vadd.xlane.f32.xlu0 %v512
    %v514 = vpop.xlane.xlu0 %513
    %v515 = vsel %vm270, %v497, 0.0
    %516 = vadd.xlane.f32.xlu0 %v515
    %v517 = vpop.xlane.xlu0 %516
    %v518 = vsel %vm270, %v499, 0.0
    %519 = vadd.xlane.f32.xlu0 %v518
    %v520 = vpop.xlane.xlu0 %519
    %v521 = vsel %vm270, %v501, 0.0
    %522 = vadd.xlane.f32.xlu0 %v521
    %v523 = vpop.xlane.xlu0 %522
    %v524 = vsel %vm270, %v503, 0.0
    %525 = vadd.xlane.f32.xlu0 %v524
    %v526 = vpop.xlane.xlu0 %525
    %v527 = vsel %vm270, %v505, 0.0
    %528 = vadd.xlane.f32.xlu0 %v527
    %v529 = vpop.xlane.xlu0 %528
    %v530 = vrcp.pop %v508
    %v531 = vrcp.pop %v511
    %v532 = vrcp.pop %v514
    %v533 = vrcp.pop %v517
    %v534 = vrcp.pop %v520
    %v535 = vrcp.pop %v523
    %v536 = vrcp.pop %v526
    %v537 = vrcp.pop %v529
    %v538 = vmul.f32 %v491, %v530
    %v539 = vmul.f32 %v493, %v531
    %v540 = vmul.f32 %v495, %v532
    %v541 = vmul.f32 %v497, %v533
    %v542 = vmul.f32 %v499, %v534
    %v543 = vmul.f32 %v501, %v535
    %v544 = vmul.f32 %v503, %v536
    %v545 = vmul.f32 %v505, %v537
    %v546 = vpack.c.bf16 %v538, %v538
    %v547 = vpack.c.bf16 %v539, %v539
    %v548 = vpack.c.bf16 %v540, %v540
    %v549 = vpack.c.bf16 %v541, %v541
    %v550 = vpack.c.bf16 %v542, %v542
    %v551 = vpack.c.bf16 %v543, %v543
    %v552 = vpack.c.bf16 %v544, %v544
    %v553 = vpack.c.bf16 %v545, %v545
    %554 = vrot.lane.b32.xlu0 %v267, 64
    %v555 = vpop.permute.xlu0 %554
    %v557 = vsel %vm270, %v546, 0
    %vm559 = vcmask 1043456
    %v561 = vsel %vm559, %v555, 0
    %563 = vmatpush.bf16.msra.mxu0 0
    %564 = vmatpush.bf16.msra.mxu0 0
    %565 = vmatpush.bf16.msra.mxu0 0
    %566 = vmatpush.bf16.msra.mxu0 0
    %567 = vmatpush.bf16.msra.mxu0 0
    %568 = vmatpush.bf16.msra.mxu0 0
    %569 = vmatpush.bf16.msra.mxu0 0
    %570 = vmatpush.bf16.msra.mxu0 %v561
    %571 = vmatmul.bf16.gmra.mxu0 %v557
    %v572 = vpop.f32.mrf.mxu0
    %v573 = vadd.f32 0.0, %v572
    %v574 = vpop.f32.mrf.mxu0
    %575 = vdwg.mxu0
    %576 = vrot.lane.b32.xlu0 %v292, 64
    %v577 = vpop.permute.xlu0 %576
    %v579 = vsel %vm270, %v547, 0
    %v582 = vsel %vm559, %v577, 0
    %584 = vmatpush.bf16.msra.mxu0 0
    %585 = vmatpush.bf16.msra.mxu0 0
    %586 = vmatpush.bf16.msra.mxu0 0
    %587 = vmatpush.bf16.msra.mxu0 0
    %588 = vmatpush.bf16.msra.mxu0 0
    %589 = vmatpush.bf16.msra.mxu0 0
    %590 = vmatpush.bf16.msra.mxu0 0
    %591 = vmatpush.bf16.msra.mxu0 %v582
    %592 = vmatmul.bf16.gmra.mxu0 %v579
    %v593 = vpop.f32.mrf.mxu0
    %v594 = vadd.f32 0.0, %v593
    %v595 = vpop.f32.mrf.mxu0
    %596 = vdwg.mxu0
    %597 = vrot.lane.b32.xlu0 %v316, 64
    %v598 = vpop.permute.xlu0 %597
    %v600 = vsel %vm270, %v548, 0
    %v603 = vsel %vm559, %v598, 0
    %605 = vmatpush.bf16.msra.mxu0 0
    %606 = vmatpush.bf16.msra.mxu0 0
    %607 = vmatpush.bf16.msra.mxu0 0
    %608 = vmatpush.bf16.msra.mxu0 0
    %609 = vmatpush.bf16.msra.mxu0 0
    %610 = vmatpush.bf16.msra.mxu0 0
    %611 = vmatpush.bf16.msra.mxu0 0
    %612 = vmatpush.bf16.msra.mxu0 %v603
    %613 = vmatmul.bf16.gmra.mxu0 %v600
    %v614 = vpop.f32.mrf.mxu0
    %v615 = vadd.f32 0.0, %v614
    %v616 = vpop.f32.mrf.mxu0
    %617 = vdwg.mxu0
    %618 = vrot.lane.b32.xlu0 %v340, 64
    %v619 = vpop.permute.xlu0 %618
    %v621 = vsel %vm270, %v549, 0
    %v624 = vsel %vm559, %v619, 0
    %626 = vmatpush.bf16.msra.mxu0 0
    %627 = vmatpush.bf16.msra.mxu0 0
    %628 = vmatpush.bf16.msra.mxu0 0
    %629 = vmatpush.bf16.msra.mxu0 0
    %630 = vmatpush.bf16.msra.mxu0 0
    %631 = vmatpush.bf16.msra.mxu0 0
    %632 = vmatpush.bf16.msra.mxu0 0
    %633 = vmatpush.bf16.msra.mxu0 %v624
    %634 = vmatmul.bf16.gmra.mxu0 %v621
    %v635 = vpop.f32.mrf.mxu0
    %v636 = vadd.f32 0.0, %v635
    %v637 = vpop.f32.mrf.mxu0
    %638 = vdwg.mxu0
    %639 = vrot.lane.b32.xlu0 %v364, 64
    %v640 = vpop.permute.xlu0 %639
    %v642 = vsel %vm270, %v550, 0
    %v645 = vsel %vm559, %v640, 0
    %647 = vmatpush.bf16.msra.mxu0 0
    %648 = vmatpush.bf16.msra.mxu0 0
    %649 = vmatpush.bf16.msra.mxu0 0
    %650 = vmatpush.bf16.msra.mxu0 0
    %651 = vmatpush.bf16.msra.mxu0 0
    %652 = vmatpush.bf16.msra.mxu0 0
    %653 = vmatpush.bf16.msra.mxu0 0
    %654 = vmatpush.bf16.msra.mxu0 %v645
    %655 = vmatmul.bf16.gmra.mxu0 %v642
    %v656 = vpop.f32.mrf.mxu0
    %v657 = vadd.f32 0.0, %v656
    %v658 = vpop.f32.mrf.mxu0
    %659 = vdwg.mxu0
    %660 = vrot.lane.b32.xlu0 %v388, 64
    %v661 = vpop.permute.xlu0 %660
    %v663 = vsel %vm270, %v551, 0
    %v666 = vsel %vm559, %v661, 0
    %668 = vmatpush.bf16.msra.mxu0 0
    %669 = vmatpush.bf16.msra.mxu0 0
    %670 = vmatpush.bf16.msra.mxu0 0
    %671 = vmatpush.bf16.msra.mxu0 0
    %672 = vmatpush.bf16.msra.mxu0 0
    %673 = vmatpush.bf16.msra.mxu0 0
    %674 = vmatpush.bf16.msra.mxu0 0
    %675 = vmatpush.bf16.msra.mxu0 %v666
    %676 = vmatmul.bf16.gmra.mxu0 %v663
    %v677 = vpop.f32.mrf.mxu0
    %v678 = vadd.f32 0.0, %v677
    %v679 = vpop.f32.mrf.mxu0
    %680 = vdwg.mxu0
    %681 = vrot.lane.b32.xlu0 %v412, 64
    %v682 = vpop.permute.xlu0 %681
    %v684 = vsel %vm270, %v552, 0
    %v687 = vsel %vm559, %v682, 0
    %689 = vmatpush.bf16.msra.mxu0 0
    %690 = vmatpush.bf16.msra.mxu0 0
    %691 = vmatpush.bf16.msra.mxu0 0
    %692 = vmatpush.bf16.msra.mxu0 0
    %693 = vmatpush.bf16.msra.mxu0 0
    %694 = vmatpush.bf16.msra.mxu0 0
    %695 = vmatpush.bf16.msra.mxu0 0
    %696 = vmatpush.bf16.msra.mxu0 %v687
    %697 = vmatmul.bf16.gmra.mxu0 %v684
    %v698 = vpop.f32.mrf.mxu0
    %v699 = vadd.f32 0.0, %v698
    %v700 = vpop.f32.mrf.mxu0
    %701 = vdwg.mxu0
    %702 = vrot.lane.b32.xlu0 %v436, 64
    %v703 = vpop.permute.xlu0 %702
    %v705 = vsel %vm270, %v553, 0
    %v708 = vsel %vm559, %v703, 0
    %710 = vmatpush.bf16.msra.mxu0 0
    %711 = vmatpush.bf16.msra.mxu0 0
    %712 = vmatpush.bf16.msra.mxu0 0
    %713 = vmatpush.bf16.msra.mxu0 0
    %714 = vmatpush.bf16.msra.mxu0 0
    %715 = vmatpush.bf16.msra.mxu0 0
    %716 = vmatpush.bf16.msra.mxu0 0
    %717 = vmatpush.bf16.msra.mxu0 %v708
    %718 = vmatmul.bf16.gmra.mxu0 %v705
    %v719 = vpop.f32.mrf.mxu0
    %v720 = vadd.f32 0.0, %v719
    %v721 = vpop.f32.mrf.mxu0
    %722 = vdwg.mxu0
    %725 = vrot.lane.b32.xlu0 %v615, 8
    %v726 = vpop.permute.xlu0 %725
    %727 = vrot.lane.b32.xlu0 %v636, 8
    %v728 = vpop.permute.xlu0 %727
    %733 = vrot.lane.b32.xlu0 %v657, 16
    %v734 = vpop.permute.xlu0 %733
    %735 = vrot.lane.b32.xlu0 %v678, 16
    %v736 = vpop.permute.xlu0 %735
    %741 = vrot.lane.b32.xlu0 %v699, 24
    %v742 = vpop.permute.xlu0 %741
    %743 = vrot.lane.b32.xlu0 %v720, 24
    %v744 = vpop.permute.xlu0 %743
    %v747 = vsel %vm270, %v573, %v726
    %v748 = vsel %vm270, %v594, %v728
    %vm749 = vcmask 130048
    %v750 = vsel %vm749, %v747, %v734
    %v751 = vsel %vm749, %v748, %v736
    %vm752 = vcmask 195584
    %v753 = vsel %vm752, %v750, %v742
    %v754 = vsel %vm752, %v751, %v744
    %v755 = vpack.c.bf16 %v754, %v753
    %v756 = vld [vmem:[%s5] sm:$0xf]
    %v757 = vld [vmem:[%s5 + $0x4] sm:$0xf]
    %v758 = vld [vmem:[%s5 + $0x8] sm:$0xf]
    %v759 = vld [vmem:[%s5 + $0xc] sm:$0xf]
    %v760 = vld [vmem:[%s6] sm:$0x1]
    %v762 = vperm.slane %v760, 0
    %v768 = vunpack.c.l.b16 %v756
    %v769 = vunpack.c.l.b16 %v757
    %v770 = vunpack.c.l.b16 %v758
    %v771 = vunpack.c.l.b16 %v759
    %v772 = vpack.c.b16 %v769, %v768
    %v773 = vpack.c.b16 %v771, %v770
    %v777 = vsel %vm95, %v755, 0
    %779 = vmatpush.bf16.msra.mxu0 0
    %780 = vmatpush.bf16.msra.mxu0 0
    %781 = vmatpush.bf16.msra.mxu0 0
    %782 = vmatpush.bf16.msra.mxu0 0
    %783 = vmatpush.bf16.msra.mxu0 0
    %784 = vmatpush.bf16.msra.mxu0 0
    %785 = vmatpush.bf16.msra.mxu0 %v773
    %786 = vmatpush.bf16.msra.mxu0 %v772
    %787 = vmatmul.bf16.gmra.mxu0 %v777
    %v788 = vpop.f32.mrf.mxu0
    %v789 = vadd.f32 %v762, %v788
    %v790 = vpop.f32.mrf.mxu0
    %v791 = vadd.f32 %v762, %v790
    %792 = vdwg.mxu0
    %v793 = vadd.f32 %v167, %v789
    %v794 = vadd.f32 %v168, %v791
    %v795 = vsel %vm95, %v793, 0.0
    %796 = vadd.xlane.f32.xlu0 %v795
    %v797 = vpop.xlane.xlu0 %796
    %v798 = vsel %vm95, %v794, 0.0
    %799 = vadd.xlane.f32.xlu0 %v798
    %v800 = vpop.xlane.xlu0 %799
    %v801 = vmul.f32 %v797, %v108
    %v802 = vmul.f32 %v800, %v108
    %v803 = vsub.f32 %v793, %v801
    %v804 = vsub.f32 %v794, %v802
    %v805 = vmul.f32 %v803, %v803
    %v806 = vmul.f32 %v804, %v804
    %v807 = vsel %vm95, %v805, 0.0
    %808 = vadd.xlane.f32.xlu0 %v807
    %v809 = vpop.xlane.xlu0 %808
    %v810 = vsel %vm95, %v806, 0.0
    %811 = vadd.xlane.f32.xlu0 %v810
    %v812 = vpop.xlane.xlu0 %811
    %v813 = vmul.f32 %v809, %v108
    %v814 = vmul.f32 %v812, %v108
    %v815 = vadd.f32 %v813, 1e-05
    %v816 = vadd.f32 %v814, 1e-05
    %v817 = vrsqrt.pop %v815
    %v818 = vmul.f32 %v817, %v815
    %v819 = vmul.f32 %v818, %v817
    %v820 = vmul.f32 0.5, %v819
    %v821 = vsub.f32 1.5, %v820
    %v822 = vmul.f32 %v817, %v821
    %vm823 = vweird.f32 %v815
    %vm824 = vweird.f32 %v817
    %vm825 = vmor %vm823, %vm824
    %v826 = vsel %vm825, %v817, %v822
    %v827 = vrsqrt.pop %v816
    %v828 = vmul.f32 %v827, %v816
    %v829 = vmul.f32 %v828, %v827
    %v830 = vmul.f32 0.5, %v829
    %v831 = vsub.f32 1.5, %v830
    %v832 = vmul.f32 %v827, %v831
    %vm833 = vweird.f32 %v816
    %vm834 = vweird.f32 %v827
    %vm835 = vmor %vm833, %vm834
    %v836 = vsel %vm835, %v827, %v832
    %v837 = vmul.f32 %v803, %v826
    %v838 = vmul.f32 %v804, %v836
    %v839 = vld [vmem:[%s7] sm:$0x1]
    %v841 = vperm.slane %v839, 0
    %v843 = vmul.f32 %v837, %v841
    %v844 = vmul.f32 %v838, %v841
    %v845 = vld [vmem:[%s8] sm:$0x1]
    %v847 = vperm.slane %v845, 0
    %v849 = vadd.f32 %v843, %v847
    %v850 = vadd.f32 %v844, %v847
    %v851 = vpack.c.bf16 %v850, %v849
    %v852 = vld [vmem:[#allocation7] sm:$0xf]
    %v853 = vld [vmem:[#allocation7 + $0x4] sm:$0xf]
    %v854 = vld [vmem:[#allocation7 + $0x8] sm:$0xf]
    %v855 = vld [vmem:[#allocation7 + $0xc] sm:$0xf]
    %v856 = vld [vmem:[%s10] sm:$0x1]
    %v858 = vperm.slane %v856, 0
    %v864 = vunpack.c.l.b16 %v852
    %v865 = vunpack.c.l.b16 %v853
    %v866 = vunpack.c.l.b16 %v854
    %v867 = vunpack.c.l.b16 %v855
    %v868 = vpack.c.b16 %v865, %v864
    %v869 = vpack.c.b16 %v867, %v866
    %v873 = vsel %vm95, %v851, 0
    %875 = vmatpush.bf16.msra.mxu0 0
    %876 = vmatpush.bf16.msra.mxu0 0
    %877 = vmatpush.bf16.msra.mxu0 0
    %878 = vmatpush.bf16.msra.mxu0 0
    %879 = vmatpush.bf16.msra.mxu0 0
    %880 = vmatpush.bf16.msra.mxu0 0
    %881 = vmatpush.bf16.msra.mxu0 %v869
    %882 = vmatpush.bf16.msra.mxu0 %v868
    %883 = vmatmul.bf16.gmra.mxu0 %v873
    %v884 = vpop.f32.mrf.mxu0
    %v885 = vadd.f32 %v858, %v884
    %v886 = vpop.f32.mrf.mxu0
    %v887 = vadd.f32 %v858, %v886
    %888 = vdwg.mxu0
    %v889 = vmax.f32 %v885, 0.0
    %v890 = vmax.f32 %v887, 0.0
    %v891 = vpack.c.bf16 %v890, %v889
    %v892 = vld [vmem:[%s11] sm:$0xf]
    %v893 = vld [vmem:[%s11 + $0x4] sm:$0xf]
    %v894 = vld [vmem:[%s11 + $0x8] sm:$0xf]
    %v895 = vld [vmem:[%s11 + $0xc] sm:$0xf]
    %v896 = vld [vmem:[%s11 + $0x10] sm:$0xf]
    %v897 = vld [vmem:[%s11 + $0x14] sm:$0xf]
    %v898 = vld [vmem:[%s11 + $0x18] sm:$0xf]
    %v899 = vld [vmem:[%s11 + $0x1c] sm:$0xf]
    %v900 = vld [vmem:[%s12] sm:$0x1]
    %v902 = vperm.slane %v900, 0
    %v912 = vunpack.c.l.b16 %v892
    %v913 = vunpack.c.l.b16 %v893
    %v914 = vunpack.c.l.b16 %v894
    %v915 = vunpack.c.l.b16 %v895
    %v916 = vunpack.c.l.b16 %v896
    %v917 = vunpack.c.l.b16 %v897
    %v918 = vunpack.c.l.b16 %v898
    %v919 = vunpack.c.l.b16 %v899
    %v920 = vpack.c.b16 %v913, %v912
    %v921 = vpack.c.b16 %v915, %v914
    %v922 = vpack.c.b16 %v917, %v916
    %v923 = vpack.c.b16 %v919, %v918
    %vm928 = vcmask 523264
    %v930 = vsel %vm928, %v891, 0
    %932 = vmatpush.bf16.msra.mxu0 0
    %933 = vmatpush.bf16.msra.mxu0 0
    %934 = vmatpush.bf16.msra.mxu0 0
    %935 = vmatpush.bf16.msra.mxu0 0
    %936 = vmatpush.bf16.msra.mxu0 %v923
    %937 = vmatpush.bf16.msra.mxu0 %v922
    %938 = vmatpush.bf16.msra.mxu0 %v921
    %939 = vmatpush.bf16.msra.mxu0 %v920
    %940 = vmatmul.bf16.gmra.mxu0 %v930
    %v941 = vpop.f32.mrf.mxu0
    %v942 = vadd.f32 %v902, %v941
    %v943 = vpop.f32.mrf.mxu0
    %v944 = vadd.f32 %v902, %v943
    %945 = vdwg.mxu0
    %v946 = vadd.f32 %v793, %v942
    %v947 = vadd.f32 %v794, %v944
    %948 = vst.msk [vmem:[#allocation8] sm:$0xff] %vm95, %v946
    %949 = vst.msk [vmem:[#allocation8 + $0x8] sm:$0xff] %vm95, %v947
    // Predicated region
    $region66: #{tpu_custom_call.1} parent=1 // pred_check
      _
    $region67: #{tpu_custom_call.1} parent=1 // pred_check_branch
      %951 = sbr.rel (0) target = $region69
    $region68: #{tpu_custom_call.1} parent=1 // pred_region
      %953 = vsyncadd [#allocation4], 0
      %s954 = sshll.u32 [#allocation8], 4
      %s955 = int_to_ptr.vmem [resolvable:$true] %s954
      %s956 = sshll.u32 %s13, 4
      %s957 = int_to_ptr.hbm [resolvable:$true] %s956
      %962 = dma.vmem_to_hbm [thread:$0]  %s955, 256, %s957, [#allocation4], 128, 128, 8
    $region69: #{tpu_custom_call.1} parent=1 // pred_fallthru
      _
    // Predicated region
    $region70: #{tpu_custom_call.1} parent=1 // pred_check
      _
    $region71: #{tpu_custom_call.1} parent=1 // pred_check_branch
      %964 = sbr.rel (0) target = $region73
    $region72: #{tpu_custom_call.1} parent=1 // pred_region
      %966 = dma.done [#allocation4], 256
    $region73: #{tpu_custom_call.1} parent=1 // pred_fallthru
      _
    %967 = vsyncpa [#allocation3], 1
    %968 = vsyncpa [#allocation6], 1
    %969 = vsyncpa [#allocation4], 1

</llo_original>
